<compile_context>
chip_gen: v7x
topology: tpu7x:2x2x1
jax: 0.10.0
libtpu: 0.0.40
codegen_flags: <defaults>
</compile_context>

<pallas_src>
import functools
import math

import jax
import jax.numpy as jnp
from jax.experimental import pallas as pl
from jax.experimental.pallas import tpu as pltpu

# ----------------------------- model config ---------------------------------
NUM_OBJ_CLASSES = 11          # len(obj_classes)
ATTN_CLS, SPAT_CLS, CONT_CLS = 3, 6, 17
HEAD_CLS = ATTN_CLS + SPAT_CLS + CONT_CLS
EMBED_DIM = 1936              # 512 + 512 + 512 + 200 + 200
NHEAD = 8
HEAD_DIM = EMBED_DIM // NHEAD  # 242
HEAD_DIM_PAD = 256             # padded head dim for clean MXU tiles
QKV_PAD = 2048                 # per-chunk padded width inside the fused QKV GEMM
FFN_DIM = 2048
ENC_LAYERS, DEC_LAYERS = 1, 1
OBJ_DIM = 2048
VR_DIM = 256 * 7 * 7           # 12544


# ----------------------------- small helpers ---------------------------------
def _round_up(x, m):
    return (x + m - 1) // m * m


def _pad2d(a, rows, cols):
    r, c = a.shape
    if r == rows and c == cols:
        return a
    return jnp.pad(a, ((0, rows - r), (0, cols - c)))


def _pick_tile(total, candidates, default):
    for c in candidates:
        if total % c == 0:
            return c
    return default


def _vmem_limit_bytes():
    # Budget ~70% of physical VMEM; safe on v7x (64 MiB) and v5e/v6e (128 MiB).
    try:
        cap = getattr(pltpu.get_tpu_info(), "vmem_capacity_bytes", None)
        if cap:
            return int(cap * 0.7)
    except Exception:
        pass
    return 48 * 1024 * 1024


_VMEM_LIMIT = _vmem_limit_bytes()


# ----------------------------- GEMM epilogues --------------------------------
def _ep_none(y, ex):
    return y


def _ep_relu(y, ex):
    return jnp.maximum(y, 0.0)


def _ep_sigmoid(y, ex):
    return jax.nn.sigmoid(y)


def _ep_relu_bn(y, ex):
    scale, shift = ex
    return jnp.maximum(y, 0.0) * scale + shift


def _ep_relu_bn_add(y, ex):
    scale, shift, add = ex
    return jnp.maximum(y, 0.0) * scale + shift + add


def _ep_mask_sigmoid(y, ex):
    (mask,) = ex
    return jnp.where(mask > 0.5, jax.nn.sigmoid(y), y)


def _ep_add_ln(e_real, y, ex):
    # residual add + LayerNorm over the real (unpadded) feature count e_real.
    # Zero padding of extra columns keeps the sums exact (pads contribute 0).
    res, g, b = ex
    h = y + res
    mu = jnp.sum(h, axis=-1, keepdims=True) / e_real
    var = jnp.sum(h * h, axis=-1, keepdims=True) / e_real - mu * mu
    inv = jax.lax.rsqrt(var + 1e-5)
    return (h - mu) * inv * g + b


_EPILOGUES = {
    "none": _ep_none,
    "relu": _ep_relu,
    "sigmoid": _ep_sigmoid,
    "relu_bn": _ep_relu_bn,
    "relu_bn_add": _ep_relu_bn_add,
    "mask_sigmoid": _ep_mask_sigmoid,
    "add_ln": _ep_add_ln,
}


# ----------------------------- GEMM kernel -----------------------------------
def _gemm_kernel(epilogue, nk, n_extra, *refs):
    x_ref, w_ref, b_ref = refs[0], refs[1], refs[2]
    extra_refs = refs[3:3 + n_extra]
    o_ref = refs[3 + n_extra]

    def finish(acc):
        y = acc + b_ref[...]
        ex = [r[...] for r in extra_refs]
        o_ref[...] = epilogue(y, ex).astype(o_ref.dtype)

    if nk == 1:
        # single K step: no scratch, write the epilogue result directly
        finish(jnp.dot(x_ref[...], w_ref[...],
                       preferred_element_type=jnp.float32))
    else:
        acc_ref = refs[4 + n_extra]
        k = pl.program_id(2)

        @pl.when(k == 0)
        def _():
            acc_ref[...] = jnp.zeros_like(acc_ref)

        acc_ref[...] += jnp.dot(x_ref[...], w_ref[...],
                                preferred_element_type=jnp.float32)

        @pl.when(k == nk - 1)
        def _():
            finish(acc_ref[...])


def gemm_pallas(x, w, b, epilogue="none", extras=(), ln_count=None):
    """y = epilogue(x @ w + b, extras).

    x: (M, K) activations (cast to bf16), w: (K, N) weights (bf16), b: (N,) f32.
    extras: sequence of (array, kind), kind in {'col', 'mat'}:
        'col' -> shape (N,) broadcast over rows, 'mat' -> shape (M, N).
    """
    M, K = x.shape
    Kw, N = w.shape
    assert K == Kw
    full_n = (epilogue == "add_ln")   # LayerNorm needs the whole row per block

    # ---- tiling / padding ----
    M8 = _round_up(M, 8)
    if M8 > 512:
        tm = 256
        Mp = _round_up(M, tm)
    else:
        tm, Mp = M8, M8

    Np = _round_up(N, 128)
    if full_n or Np <= 512:
        tn = Np
    else:
        tn = _pick_tile(Np, (512, 384, 256), 128)

    Kp = _round_up(K, 128)
    if Kp <= 512:
        tk = Kp
    else:
        tk = _pick_tile(Kp, (512, 448, 384, 320, 256), None)
        if tk is None:
            tk = 512
            Kp = _round_up(K, 512)

    nm, nn, nk = Mp // tm, Np // tn, Kp // tk

    xb = _pad2d(x, Mp, Kp).astype(jnp.bfloat16)
    wb = _pad2d(w, Kp, Np).astype(jnp.bfloat16)
    bb = _pad2d(b.reshape(1, N).astype(jnp.float32), 1, Np)

    in_arrays = [xb, wb, bb]
    in_specs = [
        pl.BlockSpec((tm, tk), lambda m, n, k: (m, k)),
        pl.BlockSpec((tk, tn), lambda m, n, k: (k, n)),
        pl.BlockSpec((1, tn), lambda m, n, k: (0, n)),
    ]
    for arr, kind in extras:
        if kind == "col":
            a = arr.reshape(1, -1).astype(jnp.float32)
            in_arrays.append(_pad2d(a, 1, Np))
            in_specs.append(pl.BlockSpec((1, tn), lambda m, n, k: (0, n)))
        else:  # 'mat'
            a = arr.astype(jnp.float32)
            in_arrays.append(_pad2d(a, Mp, Np))
            in_specs.append(pl.BlockSpec((tm, tn), lambda m, n, k: (m, n)))

    ep_fn = _EPILOGUES[epilogue]
    if epilogue == "add_ln":
        ep_fn = functools.partial(ep_fn, float(ln_count if ln_count else N))

    kernel = functools.partial(_gemm_kernel, ep_fn, nk, len(extras))
    scratch = [] if nk == 1 else [pltpu.VMEM((tm, tn), jnp.float32)]

    out = pl.pallas_call(
        kernel,
        out_shape=jax.ShapeDtypeStruct((Mp, Np), jnp.float32),
        grid=(nm, nn, nk),
        in_specs=in_specs,
        out_specs=pl.BlockSpec((tm, tn), lambda m, n, k: (m, n)),
        scratch_shapes=scratch,
        compiler_params=pltpu.CompilerParams(
            dimension_semantics=("parallel", "parallel", "arbitrary"),
            vmem_limit_bytes=_VMEM_LIMIT),
    )(*in_arrays)
    return out[:M, :N]


# ----------------------------- attention kernel -------------------------------
def _attn_kernel(scale, q_ref, k_ref, v_ref, bias_ref, o_ref):
    q = q_ref[0]                       # (tq, Dp) bf16
    k = k_ref[0]                       # (Nk, Dp) bf16
    v = v_ref[0]                       # (Nk, Dp) bf16
    s = jnp.einsum("qd,kd->qk", q, k,
                   preferred_element_type=jnp.float32) * scale
    s = s + bias_ref[...]
    s = s - jnp.max(s, axis=-1, keepdims=True)
    p = jnp.exp(s)
    denom = jnp.sum(p, axis=-1, keepdims=True)
    p = p * pl.reciprocal(denom, approx=True)
    o_ref[0] = jnp.dot(p.astype(v.dtype), v,
                       preferred_element_type=jnp.float32).astype(o_ref.dtype)


def attention_pallas(q, k, v, bias):
    """Multi-head attention.  q/k/v: (N, EMBED_DIM) f32, bias: (N, N)."""
    N = q.shape[0]

    def to_heads(t):
        t = t.reshape(N, NHEAD, HEAD_DIM)
        t = jnp.pad(t, ((0, 0), (0, 0), (0, HEAD_DIM_PAD - HEAD_DIM)))
        return t.transpose(1, 0, 2)                       # (H, N, Dp)

    qh, kh, vh = to_heads(q), to_heads(k), to_heads(v)

    Nq = _round_up(N, 8)
    if Nq > 512:
        tq = 256
        Nq = _round_up(N, tq)
    else:
        tq = Nq
    Nk = _round_up(N, 128)

    def pad_seq(t, n_to):
        return jnp.pad(t, ((0, 0), (0, n_to - N), (0, 0)))

    qh = pad_seq(qh, Nq).astype(jnp.bfloat16)
    kh = pad_seq(kh, Nk).astype(jnp.bfloat16)
    vh = pad_seq(vh, Nk).astype(jnp.bfloat16)

    bias_p = jnp.full((Nq, Nk), -1e9, jnp.float32)
    bias_p = bias_p.at[:N, :N].set(bias)
    bias_p = bias_p.at[N:, :].set(0.0)   # padded query rows: finite softmax

    kernel = functools.partial(_attn_kernel, 1.0 / math.sqrt(HEAD_DIM))
    out = pl.pallas_call(
        kernel,
        out_shape=jax.ShapeDtypeStruct((NHEAD, Nq, HEAD_DIM_PAD), jnp.float32),
        grid=(NHEAD, Nq // tq),
        in_specs=[
            pl.BlockSpec((1, tq, HEAD_DIM_PAD), lambda h, qi: (h, qi, 0)),
            pl.BlockSpec((1, Nk, HEAD_DIM_PAD), lambda h, qi: (h, 0, 0)),
            pl.BlockSpec((1, Nk, HEAD_DIM_PAD), lambda h, qi: (h, 0, 0)),
            pl.BlockSpec((tq, Nk), lambda h, qi: (qi, 0)),
        ],
        out_specs=pl.BlockSpec((1, tq, HEAD_DIM_PAD), lambda h, qi: (h, qi, 0)),
        compiler_params=pltpu.CompilerParams(
            dimension_semantics=("parallel", "parallel"),
            vmem_limit_bytes=_VMEM_LIMIT),
    )(qh, kh, vh, bias_p)
    out = out[:, :N, :HEAD_DIM].transpose(1, 0, 2).reshape(N, EMBED_DIM)
    return out


# ----------------------------- max-pool kernel --------------------------------
def _pool_max_kernel(x_ref, o_ref):
    o_ref[...] = jnp.max(x_ref[...], axis=0)


def maxpool3x3s2p1_nhwc(x):
    """MaxPool2d(kernel=3, stride=2, pad=1) on NHWC data, channel-last lanes."""
    B, H, W, C = x.shape
    Ho = (H + 2 - 3) // 2 + 1
    Wo = (W + 2 - 3) // 2 + 1
    xp = jnp.pad(x, ((0, 0), (1, 1), (1, 1), (0, 0)), constant_values=-1e30)
    taps = []
    for i in range(3):
        for j in range(3):
            taps.append(xp[:, i:i + 2 * Ho:2, j:j + 2 * Wo:2, :][:, :Ho, :Wo, :])
    taps = jnp.stack(taps, axis=0).reshape(9, B * Ho * Wo, C)

    M = B * Ho * Wo
    Mp = _round_up(M, 8)
    if Mp > 1024:
        tm = 512
        Mp = _round_up(M, tm)
    else:
        tm = Mp
    Cp = _round_up(C, 128)
    taps = jnp.pad(taps, ((0, 0), (0, Mp - M), (0, Cp - C)))

    out = pl.pallas_call(
        _pool_max_kernel,
        out_shape=jax.ShapeDtypeStruct((Mp, Cp), jnp.float32),
        grid=(Mp // tm,),
        in_specs=[pl.BlockSpec((9, tm, Cp), lambda m: (0, m, 0))],
        out_specs=pl.BlockSpec((tm, Cp), lambda m: (m, 0)),
        compiler_params=pltpu.CompilerParams(
            dimension_semantics=("parallel",),
            vmem_limit_bytes=_VMEM_LIMIT),
    )(taps)
    return out[:M, :C].reshape(B, Ho, Wo, C)


# ----------------------------- JAX glue helpers -------------------------------
def im2col_nhwc(x, k, stride, pad):
    """NHWC conv input -> (N*Ho*Wo, k*k*C) patch matrix, (kh, kw, C) inner order."""
    N, H, W, C = x.shape
    Ho = (H + 2 * pad - k) // stride + 1
    Wo = (W + 2 * pad - k) // stride + 1
    xp = jnp.pad(x, ((0, 0), (pad, pad), (pad, pad), (0, 0)))
    pats = []
    for i in range(k):
        for j in range(k):
            pats.append(
                xp[:, i:i + stride * Ho:stride, j:j + stride * Wo:stride, :]
                [:, :Ho, :Wo, :])
    cols = jnp.stack(pats, axis=3)                     # (N, Ho, Wo, k*k, C)
    return cols.reshape(N * Ho * Wo, k * k * C), Ho, Wo


# ----------------------------- transformer -----------------------------------
def transformer_layer(x, attn_bias, p):
    N = x.shape[0]
    # fused QKV projection (single GEMM, each chunk padded to QKV_PAD columns)
    qkv = gemm_pallas(x, p['wqkv'], p['bqkv'])
    q = qkv[:, 0:EMBED_DIM]
    k = qkv[:, QKV_PAD:QKV_PAD + EMBED_DIM]
    v = qkv[:, 2 * QKV_PAD:2 * QKV_PAD + EMBED_DIM]

    attn = attention_pallas(q, k, v, attn_bias)

    # W_o projection with fused residual-add + LayerNorm (dropout=id in eval)
    x = gemm_pallas(attn, p['wo'], p['bo'], epilogue='add_ln',
                    extras=[(x, 'mat'), (p['ln1_g'], 'col'), (p['ln1_b'], 'col')],
                    ln_count=EMBED_DIM)

    # FFN: relu GEMM, then W2 GEMM with fused residual-add + LayerNorm
    ff = gemm_pallas(x, p['w1'], p['b1'], epilogue='relu')
    x = gemm_pallas(ff, p['w2'], p['b2'], epilogue='add_ln',
                    extras=[(x, 'mat'), (p['ln2_g'], 'col'), (p['ln2_b'], 'col')],
                    ln_count=EMBED_DIM)
    return x


def glocal_transformer(x, im_idx, params):
    P = x.shape[0]
    same = (im_idx[:, None] == im_idx[None, :])
    spatial_bias = jnp.where(same, 0.0, -1e9).astype(jnp.float32)
    temporal_bias = jnp.zeros((P, P), jnp.float32)
    for lp in params['enc_layers']:
        x = transformer_layer(x, spatial_bias, lp)
    for lp in params['dec_layers']:
        x = transformer_layer(x, temporal_bias, lp)
    return x, None, None


# ----------------------------- STTran forward --------------------------------
def sttran_forward(params, entry):
    entry = dict(entry)

    # ObjectClassifier, mode == PREDCLS
    entry['pred_labels'] = entry['labels']

    pair = entry['pair_idx']
    feats = entry['features']

    subj_rep = gemm_pallas(feats[pair[:, 0]], params['subj_fc_w'], params['subj_fc_b'])
    obj_rep = gemm_pallas(feats[pair[:, 1]], params['obj_fc_w'], params['obj_fc_b'])

    # union_func1: 1x1 Conv2d(1024->256) as a channel-last GEMM
    uf = entry['union_feat']                                   # (P,1024,7,7) NCHW
    P = uf.shape[0]
    u_flat = uf.transpose(0, 2, 3, 1).reshape(P * 49, 1024)    # rows (n,h,w)
    u_out = gemm_pallas(u_flat, params['union_w'], params['union_b'])   # (P*49,256)

    # self.conv branch on spatial masks (P,2,27,27): NHWC im2col GEMMs with
    # fused bias+ReLU+BatchNorm epilogues; union add fused into conv2 epilogue.
    sm = entry['spatial_masks'].transpose(0, 2, 3, 1)          # (P,27,27,2)
    cols1, ho1, wo1 = im2col_nhwc(sm, 7, 2, 3)                 # (P*196, 98)
    y1 = gemm_pallas(cols1, params['conv1_w'], params['conv1_b'],
                     epilogue='relu_bn',
                     extras=[(params['bn1_scale'], 'col'),
                             (params['bn1_shift'], 'col')])    # (P*196,128)
    y1 = y1.reshape(P, ho1, wo1, 128)
    pooled = maxpool3x3s2p1_nhwc(y1)                           # (P,7,7,128)
    cols2, ho2, wo2 = im2col_nhwc(pooled, 3, 1, 1)             # (P*49, 1152)
    vr = gemm_pallas(cols2, params['conv2_w'], params['conv2_b'],
                     epilogue='relu_bn_add',
                     extras=[(params['bn2_scale'], 'col'),
                             (params['bn2_shift'], 'col'),
                             (u_out, 'mat')])                  # (P*49,256)

    # torch-style NCHW (C,H,W-major) flatten before vr_fc
    vr = vr.reshape(P, ho2, wo2, 256).transpose(0, 3, 1, 2).reshape(P, VR_DIM)
    vr = gemm_pallas(vr, params['vr_fc_w'], params['vr_fc_b'])

    x_visual = jnp.concatenate([subj_rep, obj_rep, vr], axis=1)

    subj_class = entry['pred_labels'][pair[:, 0]]
    obj_class = entry['pred_labels'][pair[:, 1]]
    subj_emb = jnp.take(params['obj_embed_w'], subj_class, axis=0)
    obj_emb = jnp.take(params['obj_embed2_w'], obj_class, axis=0)
    x_semantic = jnp.concatenate([subj_emb, obj_emb], axis=1)

    rel_features = jnp.concatenate([x_visual, x_semantic], axis=1)   # (P, 1936)

    global_output, _, _ = glocal_transformer(rel_features, entry['im_idx'], params)

    # three relation heads fused into one lane-dense GEMM; sigmoid applied to
    # the spatial/contacting columns only (column mask in the epilogue).
    logits = gemm_pallas(global_output, params['head_w'], params['head_b'],
                         epilogue='mask_sigmoid',
                         extras=[(params['head_mask'], 'col')])
    entry['attention_distribution'] = logits[:, :ATTN_CLS]
    entry['spatial_distribution'] = logits[:, ATTN_CLS:ATTN_CLS + SPAT_CLS]
    entry['contacting_distribution'] = logits[:, ATTN_CLS + SPAT_CLS:HEAD_CLS]
    return entry


# ----------------------------- parameters ------------------------------------
def init_params(key):
    kit = iter(jax.random.split(key, 256))

    def rn(*shape, std=0.02):
        return jax.random.normal(next(kit), shape, jnp.float32) * std

    def bf(x):
        return x.astype(jnp.bfloat16)

    p = {}
    p['subj_fc_w'] = bf(rn(OBJ_DIM, 512)); p['subj_fc_b'] = rn(512)
    p['obj_fc_w'] = bf(rn(OBJ_DIM, 512)); p['obj_fc_b'] = rn(512)
    p['vr_fc_w'] = bf(rn(VR_DIM, 512)); p['vr_fc_b'] = rn(512)
    p['union_w'] = bf(rn(1024, 256)); p['union_b'] = rn(256)

    # conv weights generated torch-style (Cout, Cin, kh, kw) then mapped to the
    # channel-last im2col GEMM layout (kh*kw*Cin, Cout).
    w1 = rn(128, 2, 7, 7)
    p['conv1_w'] = bf(w1.transpose(2, 3, 1, 0).reshape(7 * 7 * 2, 128))
    p['conv1_b'] = rn(128)
    w2 = rn(256, 128, 3, 3)
    p['conv2_w'] = bf(w2.transpose(2, 3, 1, 0).reshape(3 * 3 * 128, 256))
    p['conv2_b'] = rn(256)

    for idx, c in ((1, 128), (2, 256)):
        gamma = 1.0 + rn(c, std=0.1)
        beta = rn(c, std=0.1)
        rmean = rn(c, std=0.1)
        rvar = 1.0 + jnp.abs(rn(c, std=0.1))
        scale = gamma / jnp.sqrt(rvar + 1e-5)
        p[f'bn{idx}_scale'] = scale
        p[f'bn{idx}_shift'] = beta - rmean * scale

    p['obj_embed_w'] = rn(NUM_OBJ_CLASSES, 200, std=0.1)
    p['obj_embed2_w'] = rn(NUM_OBJ_CLASSES, 200, std=0.1)

    def tlayer():
        wq, bq = rn(EMBED_DIM, EMBED_DIM), rn(EMBED_DIM)
        wk, bk = rn(EMBED_DIM, EMBED_DIM), rn(EMBED_DIM)
        wv, bv = rn(EMBED_DIM, EMBED_DIM), rn(EMBED_DIM)

        def padc(w):
            return jnp.pad(w, ((0, 0), (0, QKV_PAD - EMBED_DIM)))

        def padb(b):
            return jnp.pad(b, (0, QKV_PAD - EMBED_DIM))

        wqkv = jnp.concatenate([padc(wq), padc(wk), padc(wv)], axis=1)
        bqkv = jnp.concatenate([padb(bq), padb(bk), padb(bv)])
        return dict(
            wqkv=bf(wqkv), bqkv=bqkv,
            wo=bf(rn(EMBED_DIM, EMBED_DIM)), bo=rn(EMBED_DIM),
            ln1_g=1.0 + rn(EMBED_DIM, std=0.05), ln1_b=rn(EMBED_DIM, std=0.05),
            w1=bf(rn(EMBED_DIM, FFN_DIM)), b1=rn(FFN_DIM),
            w2=bf(rn(FFN_DIM, EMBED_DIM)), b2=rn(EMBED_DIM),
            ln2_g=1.0 + rn(EMBED_DIM, std=0.05), ln2_b=rn(EMBED_DIM, std=0.05),
        )

    p['enc_layers'] = [tlayer() for _ in range(ENC_LAYERS)]
    p['dec_layers'] = [tlayer() for _ in range(DEC_LAYERS)]

    # fused relation classifier heads: [attention | spatial | contacting]
    a_w, a_b = rn(EMBED_DIM, ATTN_CLS), rn(ATTN_CLS)
    s_w, s_b = rn(EMBED_DIM, SPAT_CLS), rn(SPAT_CLS)
    c_w, c_b = rn(EMBED_DIM, CONT_CLS), rn(CONT_CLS)
    p['head_w'] = bf(jnp.concatenate([a_w, s_w, c_w], axis=1))
    p['head_b'] = jnp.concatenate([a_b, s_b, c_b])
    p['head_mask'] = jnp.concatenate(
        [jnp.zeros(ATTN_CLS), jnp.ones(SPAT_CLS + CONT_CLS)]).astype(jnp.float32)
    return p


# ----------------------------- main -------------------------------------------
if __name__ == "__main__":
    key = jax.random.PRNGKey(0)
    pkey, dkey = jax.random.split(key)
    params = init_params(pkey)

    ks = jax.random.split(dkey, 8)
    n_obj = 6     # detected objects across the clip
    P = 4         # subject-object pairs (2 frames x 2 pairs)

    entry = {
        'features': jax.random.normal(ks[0], (n_obj, OBJ_DIM), jnp.float32),
        'labels': jax.random.randint(ks[1], (n_obj,), 0, NUM_OBJ_CLASSES,
                                     dtype=jnp.int32),
        'pair_idx': jnp.array([[0, 1], [0, 2], [3, 4], [3, 5]], dtype=jnp.int32),
        'im_idx': jnp.array([0.0, 0.0, 1.0, 1.0], dtype=jnp.float32),
        'union_feat': jax.random.normal(ks[2], (P, 1024, 7, 7), jnp.float32),
        'spatial_masks': jax.random.uniform(ks[3], (P, 2, 27, 27),
                                            jnp.float32) - 0.5,
    }

    out = sttran_forward(params, entry)
    jax.block_until_ready(out['attention_distribution'])
    jax.block_until_ready(out['spatial_distribution'])
    jax.block_until_ready(out['contacting_distribution'])

    assert out['attention_distribution'].shape == (P, ATTN_CLS)
    assert out['spatial_distribution'].shape == (P, SPAT_CLS)
    assert out['contacting_distribution'].shape == (P, CONT_CLS)
    assert bool(jnp.all(jnp.isfinite(out['attention_distribution'])))
    assert bool(jnp.all((out['spatial_distribution'] >= 0.0)
                        & (out['spatial_distribution'] <= 1.0)))
    assert bool(jnp.all((out['contacting_distribution'] >= 0.0)
                        & (out['contacting_distribution'] <= 1.0)))
    print("KERNEL_OK")
</pallas_src>

<mosaic_0001>
module attributes {stable_mosaic.version = 11 : i64} {
  func.func @_gemm_kernel(%arg0: i32, %arg1: i32, %arg2: i32, %arg3: memref<8x512xbf16, #tpu.memory_space<vmem>>, %arg4: memref<512x512xbf16, #tpu.memory_space<vmem>>, %arg5: memref<1x512xf32, #tpu.memory_space<vmem>>, %arg6: memref<8x512xf32, #tpu.memory_space<vmem>>, %arg7: memref<8x512xf32, #tpu.memory_space<vmem>>) attributes {dimension_semantics = [#tpu.dimension_semantics<parallel>, #tpu.dimension_semantics<parallel>, #tpu.dimension_semantics<arbitrary>], iteration_bounds = array<i64: 1, 1, 4>, scalar_prefetch = 0 : i64, scratch_operands = 1 : i64, tpu.core_type = #tpu.core_type<tc>, window_params = [{transform_indices = @transform_0, window_bounds = array<i64: 8, 512>}, {transform_indices = @transform_1, window_bounds = array<i64: 512, 512>}, {transform_indices = @transform_2, window_bounds = array<i64: 1, 512>}, {transform_indices = @transform_3, window_bounds = array<i64: 8, 512>}]} {
    %c0_i32 = arith.constant 0 : i32
    %0 = arith.cmpi eq, %arg2, %c0_i32 : i32
    %1 = arith.extui %0 : i1 to i32
    %c0_i32_0 = arith.constant 0 : i32
    %2 = arith.cmpi ne, %1, %c0_i32_0 : i32
    scf.if %2 {
      %cst_9 = arith.constant 0.000000e+00 : f32
      %12 = vector.broadcast %cst_9 : f32 to vector<8x512xf32>
      %c0_10 = arith.constant 0 : index
      %c0_11 = arith.constant 0 : index
      %13 = vector.load %arg7[%c0_10, %c0_11] : memref<8x512xf32, #tpu.memory_space<vmem>>, vector<8x512xf32>
      tpu.vector_store %arg7[%c0_10, %c0_11], %12 {strides = array<i32>} : memref<8x512xf32, #tpu.memory_space<vmem>>, vector<8x512xf32>,
    } else {
    }
    %c0 = arith.constant 0 : index
    %c0_1 = arith.constant 0 : index
    %3 = vector.load %arg7[%c0, %c0_1] : memref<8x512xf32, #tpu.memory_space<vmem>>, vector<8x512xf32>
    %c0_2 = arith.constant 0 : index
    %c0_3 = arith.constant 0 : index
    %4 = vector.load %arg3[%c0_2, %c0_3] : memref<8x512xbf16, #tpu.memory_space<vmem>>, vector<8x512xbf16>
    %c0_4 = arith.constant 0 : index
    %c0_5 = arith.constant 0 : index
    %5 = vector.load %arg4[%c0_4, %c0_5] : memref<512x512xbf16, #tpu.memory_space<vmem>>, vector<512x512xbf16>
    %cst = arith.constant dense<0.000000e+00> : vector<8x512xf32>
    %6 = tpu.matmul %4, %5, %cst {dimension_numbers = #tpu.dot_dimension_numbers<[1], [0], [0], [1], [0, 0, 1, 1], [], []>} : vector<8x512xbf16>, vector<512x512xbf16>, vector<8x512xf32> -> vector<8x512xf32>
    %7 = arith.addf %3, %6 : vector<8x512xf32>
    %c0_6 = arith.constant 0 : index
    %c0_7 = arith.constant 0 : index
    %8 = vector.load %arg7[%c0_6, %c0_7] : memref<8x512xf32, #tpu.memory_space<vmem>>, vector<8x512xf32>
    tpu.vector_store %arg7[%c0_6, %c0_7], %7 {strides = array<i32>} : memref<8x512xf32, #tpu.memory_space<vmem>>, vector<8x512xf32>,
    %c3_i32 = arith.constant 3 : i32
    %9 = arith.cmpi eq, %arg2, %c3_i32 : i32
    %10 = arith.extui %9 : i1 to i32
    %c0_i32_8 = arith.constant 0 : i32
    %11 = arith.cmpi ne, %10, %c0_i32_8 : i32
    scf.if %11 {
      %c0_9 = arith.constant 0 : index
      %c0_10 = arith.constant 0 : index
      %12 = vector.load %arg7[%c0_9, %c0_10] : memref<8x512xf32, #tpu.memory_space<vmem>>, vector<8x512xf32>
      %c0_11 = arith.constant 0 : index
      %c0_12 = arith.constant 0 : index
      %13 = vector.load %arg5[%c0_11, %c0_12] : memref<1x512xf32, #tpu.memory_space<vmem>>, vector<1x512xf32>
      %14 = vector.broadcast %13 : vector<1x512xf32> to vector<8x512xf32>
      %15 = arith.addf %12, %14 : vector<8x512xf32>
      %c0_13 = arith.constant 0 : index
      %c0_14 = arith.constant 0 : index
      %16 = vector.load %arg6[%c0_13, %c0_14] : memref<8x512xf32, #tpu.memory_space<vmem>>, vector<8x512xf32>
      tpu.vector_store %arg6[%c0_13, %c0_14], %15 {strides = array<i32>} : memref<8x512xf32, #tpu.memory_space<vmem>>, vector<8x512xf32>,
    } else {
    }
    return
  }
  func.func @transform_0(%arg0: i32, %arg1: i32, %arg2: i32) -> (i32, i32) {
    %c0_i32 = arith.constant 0 : i32
    return %arg0, %arg2 : i32, i32
  }
  func.func @transform_1(%arg0: i32, %arg1: i32, %arg2: i32) -> (i32, i32) {
    %c0_i32 = arith.constant 0 : i32
    return %arg2, %arg1 : i32, i32
  }
  func.func @transform_2(%arg0: i32, %arg1: i32, %arg2: i32) -> (i32, i32) {
    %c0_i32 = arith.constant 0 : i32
    %c0_i32_0 = arith.constant 0 : i32
    return %c0_i32, %arg1 : i32, i32
  }
  func.func @transform_3(%arg0: i32, %arg1: i32, %arg2: i32) -> (i32, i32) {
    %c0_i32 = arith.constant 0 : i32
    return %arg0, %arg1 : i32, i32
  }
}

</mosaic_0001>

<llo_original>
// kernel: tpu_custom_call.1
$region0: #{tpu_custom_call.1}
  #allocation0 [shape = 'u32[]', space=smem, size = 0x4, offset = 0x4, fixed_abs, tag = 'smem constant byte address 0x4 - core index']
  #allocation1 [shape = 'u32[144,128]{1,0:T(1,128)}', space=vmem, size = 0x12000, scoped, tag = 'internal scratch']
  #allocation2 [shape = 'f32[8,512]{1,0:T(8,128)}', space=vmem, size = 0x4000, scoped, tag = 'scratch operand']
  %s0 = inlined_call_operand.hbm [shape: bf16[8,2048], index: 0, kind: input, shape index: {}]
  %s1 = inlined_call_operand.hbm [shape: bf16[2048,512], index: 1, kind: input, shape index: {}]
  %s2 = inlined_call_operand.hbm [shape: f32[1,512], index: 2, kind: input, shape index: {}]
  %s3 = inlined_call_operand.hbm [shape: f32[8,512], index: 3, kind: output, shape index: {}]
  %s4 = sld [smem:[#allocation0]]
  $region65: #{tpu_custom_call.1} parent=0
    _
  %s6 = ssub.s32 1, %s4
  %s7 = scalar_select 0, %s6, %s4
  $region1: #{tpu_custom_call.1} parent=0
    #allocation3 [shape = 'u8[16384]{0}', space=vmem, size = 0x4000, scoped, tag = 'input window, operand 0']
    #allocation4 [shape = 's32[2]{0}', space=sflag, size = 0x8, scoped, tag = 'scoped memory for tpu_custom_call.1']
    #allocation5 [shape = 's32[2]{0}', space=sflag, size = 0x8, scoped, tag = 'scoped memory for tpu_custom_call.1']
    #allocation6 [shape = 'u8[1048576]{0}', space=vmem, size = 0x100000, scoped, tag = 'input window, operand 1']
    #allocation7 [shape = 's32[2]{0}', space=sflag, size = 0x8, scoped, tag = 'scoped memory for tpu_custom_call.1']
    #allocation8 [shape = 'u8[2048]{0}', space=vmem, size = 0x800, scoped, tag = 'input window, operand 2, single buffered']
    #allocation9 [shape = 'u8[16384]{0}', space=vmem, size = 0x4000, scoped, tag = 'output window, operand 0, single buffered']
    %8 = vsyncpa [#allocation4], 0
    %s9 = scalar_lea.sflag [#allocation4], 1
    %10 = vsyncpa %s9, 0
    %11 = vsyncpa [#allocation7], 0
    %s12 = scalar_lea.sflag [#allocation7], 1
    %13 = vsyncpa %s12, 0
    %14 = vsyncpa [#allocation5], 0
    loop: start=0, step=1, limit=6
    $region2: #{tpu_custom_call.1} parent=1 // loop_pre_header
      _
    $region3: #{tpu_custom_call.1} parent=1 // loop_header
      %s16 = sphi 0, %s20
      %p17 = scmp.ge.s32.totalorder %s16, 6
      %s23 = sphi 0, %s42
      %s24 = sphi 0, %s38
      %s25 = sphi 0, %s34
      %s26 = sphi 0, %s23
      %s27 = sphi 0, %s24
      %s28 = sphi 0, %s25
      %s29 = sphi 0, %s26
      %s30 = sphi 0, %s27
      %s31 = sphi 0, %s28
      %s47 = sphi 0, %s49
      %s50 = sphi 0, %s47
      %s51 = sphi 0, %s50
      %s67 = sphi 0, %s51
      %s75 = sphi 0, %s77
      %s78 = sphi 0, %s75
      %s79 = sphi 0, %s78
      %s95 = sphi 0, %s79
      %s101 = sphi 0, %s103
      %s104 = sphi 0, %s101
      %s105 = sphi 0, %s104
      %s121 = sphi 0, %s105
      %s129 = sphi 0, %s131
      %s132 = sphi 0, %s129
      %s133 = sphi 0, %s132
      %s149 = sphi 0, %s133
    $region4: #{tpu_custom_call.1} parent=1 // loop_header_branch
      %19 = sbr.rel (%p17) target = $region8
    $region5: #{tpu_custom_call.1} parent=1 // loop_body
      %s21 = ssub.s32 %s16, 1
      %s22 = ssub.s32 %s16, 2
      %s32 = sadd.s32 1, %s25
      %p33 = scmp.ge.s32.totalorder %s32, 4
      %s34 = scalar_select %p33, 0, %s32
      %s35 = sadd.s32 1, %s24
      %s36 = scalar_select %p33, %s35, %s24
      %p37 = scmp.ge.s32.totalorder %s36, 1
      %s38 = scalar_select %p37, 0, %s36
      %s39 = sadd.s32 1, %s23
      %s40 = scalar_select %p37, %s39, %s23
      %p41 = scmp.ge.s32.totalorder %s40, 1
      %s42 = scalar_select %p41, 0, %s40
      %s43 = ssub.s32 %s23, %s42
      %s44 = ssub.s32 %s25, %s34
      %s45 = sor.u32 %s43, %s44
      %p46 = scmp.eq.s32.totalorder %s45, 0
      %s48 = sadd.s32 %s47, 1
      %s49 = scalar_select %p46, %s47, %s48
      %p52 = pneg %p46
      %p53 = scmp.eq.s32.totalorder %s16, 3
      %p54 = por %p52, %p53
      %p55 = scmp.ne.s32.totalorder %s47, %s50
      %p56 = scmp.eq.s32.totalorder %s16, 0
      %p57 = por %p55, %p56
      %p58 = scmp.ne.s32.totalorder %s47, %s50
      %p59 = scmp.eq.s32.totalorder %s21, 3
      %p60 = por %p58, %p59
      %p61 = scmp.ne.s32.totalorder %s50, %s51
      %p62 = scmp.eq.s32.totalorder %s21, 0
      %p63 = por %p61, %p62
      %p64 = scmp.ne.s32.totalorder %s50, %s51
      %p65 = scmp.eq.s32.totalorder %s22, 3
      %p66 = por %p64, %p65
      %p68 = scmp.ne.s32.totalorder %s51, %s67
      %p69 = scmp.eq.s32.totalorder %s22, 0
      %p70 = por %p68, %p69
      %s71 = ssub.s32 %s25, %s34
      %s72 = ssub.s32 %s24, %s38
      %s73 = sor.u32 %s71, %s72
      %p74 = scmp.eq.s32.totalorder %s73, 0
      %s76 = sadd.s32 %s75, 1
      %s77 = scalar_select %p74, %s75, %s76
      %p80 = pneg %p74
      %p81 = scmp.eq.s32.totalorder %s16, 3
      %p82 = por %p80, %p81
      %p83 = scmp.ne.s32.totalorder %s75, %s78
      %p84 = scmp.eq.s32.totalorder %s16, 0
      %p85 = por %p83, %p84
      %p86 = scmp.ne.s32.totalorder %s75, %s78
      %p87 = scmp.eq.s32.totalorder %s21, 3
      %p88 = por %p86, %p87
      %p89 = scmp.ne.s32.totalorder %s78, %s79
      %p90 = scmp.eq.s32.totalorder %s21, 0
      %p91 = por %p89, %p90
      %p92 = scmp.ne.s32.totalorder %s78, %s79
      %p93 = scmp.eq.s32.totalorder %s22, 3
      %p94 = por %p92, %p93
      %p96 = scmp.ne.s32.totalorder %s79, %s95
      %p97 = scmp.eq.s32.totalorder %s22, 0
      %p98 = por %p96, %p97
      %s99 = ssub.s32 %s24, %s38
      %p100 = scmp.eq.s32.totalorder %s99, 0
      %s102 = sadd.s32 %s101, 1
      %s103 = scalar_select %p100, %s101, %s102
      %p106 = pneg %p100
      %p107 = scmp.eq.s32.totalorder %s16, 3
      %p108 = por %p106, %p107
      %p109 = scmp.ne.s32.totalorder %s101, %s104
      %p110 = scmp.eq.s32.totalorder %s16, 0
      %p111 = por %p109, %p110
      %p112 = scmp.ne.s32.totalorder %s101, %s104
      %p113 = scmp.eq.s32.totalorder %s21, 3
      %p114 = por %p112, %p113
      %p115 = scmp.ne.s32.totalorder %s104, %s105
      %p116 = scmp.eq.s32.totalorder %s21, 0
      %p117 = por %p115, %p116
      %p118 = scmp.ne.s32.totalorder %s104, %s105
      %p119 = scmp.eq.s32.totalorder %s22, 3
      %p120 = por %p118, %p119
      %p122 = scmp.ne.s32.totalorder %s105, %s121
      %p123 = scmp.eq.s32.totalorder %s22, 0
      %p124 = por %p122, %p123
      %s125 = ssub.s32 %s23, %s42
      %s126 = ssub.s32 %s24, %s38
      %s127 = sor.u32 %s125, %s126
      %p128 = scmp.eq.s32.totalorder %s127, 0
      %s130 = sadd.s32 %s129, 1
      %s131 = scalar_select %p128, %s129, %s130
      %p134 = pneg %p128
      %p135 = scmp.eq.s32.totalorder %s16, 3
      %p136 = por %p134, %p135
      %p137 = scmp.ne.s32.totalorder %s129, %s132
      %p138 = scmp.eq.s32.totalorder %s16, 0
      %p139 = por %p137, %p138
      %p140 = scmp.ne.s32.totalorder %s129, %s132
      %p141 = scmp.eq.s32.totalorder %s21, 3
      %p142 = por %p140, %p141
      %p143 = scmp.ne.s32.totalorder %s132, %s133
      %p144 = scmp.eq.s32.totalorder %s21, 0
      %p145 = por %p143, %p144
      %p146 = scmp.ne.s32.totalorder %s132, %s133
      %p147 = scmp.eq.s32.totalorder %s22, 3
      %p148 = por %p146, %p147
      %p150 = scmp.ne.s32.totalorder %s133, %s149
      %p151 = scmp.eq.s32.totalorder %s22, 0
      %p152 = por %p150, %p151
      %p153 = scmp.le.s32.totalorder 1, %s16
      %p154 = scmp.lt.s32.totalorder %s16, 5
      %p155 = pnand %p153, %p154
      %p156 = pneg %p155
      // Predicated region
      $region9: #{tpu_custom_call.1} parent=5 // pred_check
        _
      $region10: #{tpu_custom_call.1} parent=5 // pred_check_branch
        %158 = sbr.rel (%p155) target = $region12
      $region11: #{tpu_custom_call.1} parent=5 // pred_region
        %s159 = ssub.s32 %s16, 1
        // Predicated region
        $region13: #{tpu_custom_call.1} parent=11 // pred_check
          %p160 = pneg %p117
        $region14: #{tpu_custom_call.1} parent=11 // pred_check_branch
          %162 = sbr.rel (%p160) target = $region16
        $region15: #{tpu_custom_call.1} parent=11 // pred_region
          %s163 = smul.u32 4, %s27
          %s165 = ssub.s32 64, 64
          %166 = vsyncadd [#allocation7], %s165
          %s167 = smul.addr %s163, 16
          %s168 = scalar_lea.hbm %s2, %s167
          %s170 = sshll.u32 [#allocation8], 4
          %s171 = int_to_ptr.vmem [resolvable:$true] %s170
          %173 = dma.hbm_to_vmem [thread:$0]  %s168, 64, %s171, [#allocation7]
        $region16: #{tpu_custom_call.1} parent=11 // pred_fallthru
          _
      $region12: #{tpu_custom_call.1} parent=5 // pred_fallthru
        _
      %p174 = scmp.lt.s32.totalorder %s16, 4
      // Predicated region
      $region17: #{tpu_custom_call.1} parent=5 // pred_check
        %p175 = pneg %p174
      $region18: #{tpu_custom_call.1} parent=5 // pred_check_branch
        %177 = sbr.rel (%p175) target = $region20
      $region19: #{tpu_custom_call.1} parent=5 // pred_region
        // Predicated region
        $region21: #{tpu_custom_call.1} parent=19 // pred_check
          %p178 = pneg %p57
        $region22: #{tpu_custom_call.1} parent=19 // pred_check_branch
          %180 = sbr.rel (%p178) target = $region24
        $region23: #{tpu_custom_call.1} parent=19 // pred_region
          %s181 = sand.u32 %s47, 1
          %s182 = scalar_lea.sflag [#allocation4], %s181
          %s183 = sand.u32 %s47, 1
          %s184 = smul.addr %s183, 16
          %s185 = scalar_lea.vmem [#allocation3], %s184
          %s186 = smul.u32 4, %s25
          %s188 = ssub.s32 256, 256
          %189 = vsyncadd %s182, %s188
          %s190 = smul.addr %s23, 16
          %s191 = sadd.s32 %s186, %s190
          %s192 = smul.addr %s191, 64
          %s193 = scalar_lea.hbm %s0, %s192
          %s195 = sshll.u32 %s185, 4
          %s196 = int_to_ptr.vmem [resolvable:$true] %s195
          %198 = dma.hbm_to_vmem [thread:$0]  %s193, 256, %s196, %s182
        $region24: #{tpu_custom_call.1} parent=19 // pred_fallthru
          _
        // Predicated region
        $region25: #{tpu_custom_call.1} parent=19 // pred_check
          %p199 = pneg %p85
        $region26: #{tpu_custom_call.1} parent=19 // pred_check_branch
          %201 = sbr.rel (%p199) target = $region28
        $region27: #{tpu_custom_call.1} parent=19 // pred_region
          %s202 = sand.u32 %s16, 1
          %s203 = scalar_lea.sflag [#allocation7], %s202
          %s204 = sand.u32 %s75, 1
          %s205 = smul.addr %s204, 1024
          %s206 = scalar_lea.vmem [#allocation6], %s205
          %s207 = smul.u32 64, %s25
          %s208 = smul.u32 4, %s24
          %s210 = ssub.s32 16384, 16384
          %211 = vsyncadd %s203, %s210
          %s212 = smul.addr %s207, 4
          %s213 = sadd.s32 %s208, %s212
          %s214 = smul.addr %s213, 64
          %s215 = scalar_lea.hbm %s1, %s214
          %s216 = sshll.u32 %s206, 4
          %s217 = int_to_ptr.vmem [resolvable:$true] %s216
          %222 = dma.hbm_to_vmem [thread:$0]  %s215, 16384, %s217, %s203, 256, 256, 16
        $region28: #{tpu_custom_call.1} parent=19 // pred_fallthru
          _
      $region20: #{tpu_custom_call.1} parent=5 // pred_fallthru
        _
      %p223 = scmp.le.s32.totalorder 1, %s16
      %p224 = scmp.lt.s32.totalorder %s16, 5
      %p225 = pnand %p223, %p224
      %p226 = pneg %p225
      // Predicated region
      $region29: #{tpu_custom_call.1} parent=5 // pred_check
        _
      $region30: #{tpu_custom_call.1} parent=5 // pred_check_branch
        %228 = sbr.rel (%p225) target = $region32
      $region31: #{tpu_custom_call.1} parent=5 // pred_region
        %s229 = ssub.s32 %s16, 1
        %s230 = sand.u32 %s50, 1
        %s231 = scalar_lea.sflag [#allocation4], %s230
        %s232 = sand.u32 %s50, 1
        %s233 = smul.addr %s232, 16
        %s234 = scalar_lea.vmem [#allocation3], %s233
        // Predicated region
        $region33: #{tpu_custom_call.1} parent=31 // pred_check
          %p235 = pneg %p63
        $region34: #{tpu_custom_call.1} parent=31 // pred_check_branch
          %237 = sbr.rel (%p235) target = $region36
        $region35: #{tpu_custom_call.1} parent=31 // pred_region
          %238 = dma.done %s231, 256
        $region36: #{tpu_custom_call.1} parent=31 // pred_fallthru
          _
        %s239 = sand.u32 %s21, 1
        %s240 = scalar_lea.sflag [#allocation7], %s239
        %s241 = sand.u32 %s78, 1
        %s242 = smul.addr %s241, 1024
        %s243 = scalar_lea.vmem [#allocation6], %s242
        // Predicated region
        $region37: #{tpu_custom_call.1} parent=31 // pred_check
          %p244 = pneg %p91
        $region38: #{tpu_custom_call.1} parent=31 // pred_check_branch
          %246 = sbr.rel (%p244) target = $region40
        $region39: #{tpu_custom_call.1} parent=31 // pred_region
          %247 = dma.done %s240, 16384
        $region40: #{tpu_custom_call.1} parent=31 // pred_fallthru
          _
        // Predicated region
        $region41: #{tpu_custom_call.1} parent=31 // pred_check
          %p248 = pneg %p117
        $region42: #{tpu_custom_call.1} parent=31 // pred_check_branch
          %250 = sbr.rel (%p248) target = $region44
        $region43: #{tpu_custom_call.1} parent=31 // pred_region
          %251 = dma.done [#allocation7], 64
        $region44: #{tpu_custom_call.1} parent=31 // pred_fallthru
          _
        %s252 = sand.u32 %s50, 1
        %s253 = scalar_lea.sflag [#allocation4], %s252
        %s254 = sand.u32 %s50, 1
        %s255 = smul.addr %s254, 16
        %s256 = scalar_lea.vmem [#allocation3], %s255
        %p257 = pneg %p63
        %p258 = pneg %p60
        %s259 = sand.u32 %s21, 1
        %s260 = scalar_lea.sflag [#allocation7], %s259
        %s261 = sand.u32 %s78, 1
        %s262 = smul.addr %s261, 1024
        %s263 = scalar_lea.vmem [#allocation6], %s262
        %p264 = pneg %p91
        %p265 = pneg %p88
        %p266 = pneg %p117
        %p267 = pneg %p114
        %p268 = pneg %p145
        %p269 = pneg %p142
        %s270 = smul.u32 4, %s28
        %s271 = smul.u32 64, %s28
        %s272 = smul.u32 4, %s27
        %s273 = smul.u32 4, %s27
        %s274 = smul.u32 4, %s27
        %p275 = scmp.eq.s32.totalorder %s28, 0
        // Predicated region
        $region45: #{tpu_custom_call.1} parent=31 // pred_check
          %p276 = pneg %p275
        $region46: #{tpu_custom_call.1} parent=31 // pred_check_branch
          %278 = sbr.rel (%p276) target = $region48
        $region47: #{tpu_custom_call.1} parent=31 // pred_region
          %279 = vst [vmem:[#allocation2] sm:$0xff] 0.0
          %280 = vst [vmem:[#allocation2 + $0x8] sm:$0xff] 0.0
          %281 = vst [vmem:[#allocation2 + $0x10] sm:$0xff] 0.0
          %282 = vst [vmem:[#allocation2 + $0x18] sm:$0xff] 0.0
        $region48: #{tpu_custom_call.1} parent=31 // pred_fallthru
          _
        %v283 = vld [vmem:[#allocation2] sm:$0xff]
        %v284 = vld [vmem:[#allocation2 + $0x8] sm:$0xff]
        %v285 = vld [vmem:[#allocation2 + $0x10] sm:$0xff]
        %v286 = vld [vmem:[#allocation2 + $0x18] sm:$0xff]
        %v287 = vld [vmem:[%s234] sm:$0xff]
        %v288 = vld [vmem:[%s234 + $0x8] sm:$0xff]
        %v289 = vld [vmem:[%s243] sm:$0xff]
        %v290 = vld [vmem:[%s243 + $0x8] sm:$0xff]
        %v291 = vld [vmem:[%s243 + $0x10] sm:$0xff]
        %v292 = vld [vmem:[%s243 + $0x18] sm:$0xff]
        %v293 = vld [vmem:[%s243 + $0x20] sm:$0xff]
        %v294 = vld [vmem:[%s243 + $0x28] sm:$0xff]
        %v295 = vld [vmem:[%s243 + $0x30] sm:$0xff]
        %v296 = vld [vmem:[%s243 + $0x38] sm:$0xff]
        %v297 = vld [vmem:[%s243 + $0x40] sm:$0xff]
        %v298 = vld [vmem:[%s243 + $0x48] sm:$0xff]
        %v299 = vld [vmem:[%s243 + $0x50] sm:$0xff]
        %v300 = vld [vmem:[%s243 + $0x58] sm:$0xff]
        %v301 = vld [vmem:[%s243 + $0x60] sm:$0xff]
        %v302 = vld [vmem:[%s243 + $0x68] sm:$0xff]
        %v303 = vld [vmem:[%s243 + $0x70] sm:$0xff]
        %v304 = vld [vmem:[%s243 + $0x78] sm:$0xff]
        %v305 = vld [vmem:[%s243 + $0x80] sm:$0xff]
        %v306 = vld [vmem:[%s243 + $0x88] sm:$0xff]
        %v307 = vld [vmem:[%s243 + $0x90] sm:$0xff]
        %v308 = vld [vmem:[%s243 + $0x98] sm:$0xff]
        %v309 = vld [vmem:[%s243 + $0xa0] sm:$0xff]
        %v310 = vld [vmem:[%s243 + $0xa8] sm:$0xff]
        %v311 = vld [vmem:[%s243 + $0xb0] sm:$0xff]
        %v312 = vld [vmem:[%s243 + $0xb8] sm:$0xff]
        %v313 = vld [vmem:[%s243 + $0xc0] sm:$0xff]
        %v314 = vld [vmem:[%s243 + $0xc8] sm:$0xff]
        %v315 = vld [vmem:[%s243 + $0xd0] sm:$0xff]
        %v316 = vld [vmem:[%s243 + $0xd8] sm:$0xff]
        %v317 = vld [vmem:[%s243 + $0xe0] sm:$0xff]
        %v318 = vld [vmem:[%s243 + $0xe8] sm:$0xff]
        %v319 = vld [vmem:[%s243 + $0xf0] sm:$0xff]
        %v320 = vld [vmem:[%s243 + $0xf8] sm:$0xff]
        %v321 = vld [vmem:[%s243 + $0x100] sm:$0xff]
        %v322 = vld [vmem:[%s243 + $0x108] sm:$0xff]
        %v323 = vld [vmem:[%s243 + $0x110] sm:$0xff]
        %v324 = vld [vmem:[%s243 + $0x118] sm:$0xff]
        %v325 = vld [vmem:[%s243 + $0x120] sm:$0xff]
        %v326 = vld [vmem:[%s243 + $0x128] sm:$0xff]
        %v327 = vld [vmem:[%s243 + $0x130] sm:$0xff]
        %v328 = vld [vmem:[%s243 + $0x138] sm:$0xff]
        %v329 = vld [vmem:[%s243 + $0x140] sm:$0xff]
        %v330 = vld [vmem:[%s243 + $0x148] sm:$0xff]
        %v331 = vld [vmem:[%s243 + $0x150] sm:$0xff]
        %v332 = vld [vmem:[%s243 + $0x158] sm:$0xff]
        %v333 = vld [vmem:[%s243 + $0x160] sm:$0xff]
        %v334 = vld [vmem:[%s243 + $0x168] sm:$0xff]
        %v335 = vld [vmem:[%s243 + $0x170] sm:$0xff]
        %v336 = vld [vmem:[%s243 + $0x178] sm:$0xff]
        %v337 = vld [vmem:[%s243 + $0x180] sm:$0xff]
        %v338 = vld [vmem:[%s243 + $0x188] sm:$0xff]
        %v339 = vld [vmem:[%s243 + $0x190] sm:$0xff]
        %v340 = vld [vmem:[%s243 + $0x198] sm:$0xff]
        %v341 = vld [vmem:[%s243 + $0x1a0] sm:$0xff]
        %v342 = vld [vmem:[%s243 + $0x1a8] sm:$0xff]
        %v343 = vld [vmem:[%s243 + $0x1b0] sm:$0xff]
        %v344 = vld [vmem:[%s243 + $0x1b8] sm:$0xff]
        %v345 = vld [vmem:[%s243 + $0x1c0] sm:$0xff]
        %v346 = vld [vmem:[%s243 + $0x1c8] sm:$0xff]
        %v347 = vld [vmem:[%s243 + $0x1d0] sm:$0xff]
        %v348 = vld [vmem:[%s243 + $0x1d8] sm:$0xff]
        %v349 = vld [vmem:[%s243 + $0x1e0] sm:$0xff]
        %v350 = vld [vmem:[%s243 + $0x1e8] sm:$0xff]
        %v351 = vld [vmem:[%s243 + $0x1f0] sm:$0xff]
        %v352 = vld [vmem:[%s243 + $0x1f8] sm:$0xff]
        %v353 = vld [vmem:[%s243 + $0x200] sm:$0xff]
        %v354 = vld [vmem:[%s243 + $0x208] sm:$0xff]
        %v355 = vld [vmem:[%s243 + $0x210] sm:$0xff]
        %v356 = vld [vmem:[%s243 + $0x218] sm:$0xff]
        %v357 = vld [vmem:[%s243 + $0x220] sm:$0xff]
        %v358 = vld [vmem:[%s243 + $0x228] sm:$0xff]
        %v359 = vld [vmem:[%s243 + $0x230] sm:$0xff]
        %v360 = vld [vmem:[%s243 + $0x238] sm:$0xff]
        %v361 = vld [vmem:[%s243 + $0x240] sm:$0xff]
        %v362 = vld [vmem:[%s243 + $0x248] sm:$0xff]
        %v363 = vld [vmem:[%s243 + $0x250] sm:$0xff]
        %v364 = vld [vmem:[%s243 + $0x258] sm:$0xff]
        %v365 = vld [vmem:[%s243 + $0x260] sm:$0xff]
        %v366 = vld [vmem:[%s243 + $0x268] sm:$0xff]
        %v367 = vld [vmem:[%s243 + $0x270] sm:$0xff]
        %v368 = vld [vmem:[%s243 + $0x278] sm:$0xff]
        %v369 = vld [vmem:[%s243 + $0x280] sm:$0xff]
        %v370 = vld [vmem:[%s243 + $0x288] sm:$0xff]
        %v371 = vld [vmem:[%s243 + $0x290] sm:$0xff]
        %v372 = vld [vmem:[%s243 + $0x298] sm:$0xff]
        %v373 = vld [vmem:[%s243 + $0x2a0] sm:$0xff]
        %v374 = vld [vmem:[%s243 + $0x2a8] sm:$0xff]
        %v375 = vld [vmem:[%s243 + $0x2b0] sm:$0xff]
        %v376 = vld [vmem:[%s243 + $0x2b8] sm:$0xff]
        %v377 = vld [vmem:[%s243 + $0x2c0] sm:$0xff]
        %v378 = vld [vmem:[%s243 + $0x2c8] sm:$0xff]
        %v379 = vld [vmem:[%s243 + $0x2d0] sm:$0xff]
        %v380 = vld [vmem:[%s243 + $0x2d8] sm:$0xff]
        %v381 = vld [vmem:[%s243 + $0x2e0] sm:$0xff]
        %v382 = vld [vmem:[%s243 + $0x2e8] sm:$0xff]
        %v383 = vld [vmem:[%s243 + $0x2f0] sm:$0xff]
        %v384 = vld [vmem:[%s243 + $0x2f8] sm:$0xff]
        %v385 = vld [vmem:[%s243 + $0x300] sm:$0xff]
        %v386 = vld [vmem:[%s243 + $0x308] sm:$0xff]
        %v387 = vld [vmem:[%s243 + $0x310] sm:$0xff]
        %v388 = vld [vmem:[%s243 + $0x318] sm:$0xff]
        %v389 = vld [vmem:[%s243 + $0x320] sm:$0xff]
        %v390 = vld [vmem:[%s243 + $0x328] sm:$0xff]
        %v391 = vld [vmem:[%s243 + $0x330] sm:$0xff]
        %v392 = vld [vmem:[%s243 + $0x338] sm:$0xff]
        %v393 = vld [vmem:[%s243 + $0x340] sm:$0xff]
        %v394 = vld [vmem:[%s243 + $0x348] sm:$0xff]
        %v395 = vld [vmem:[%s243 + $0x350] sm:$0xff]
        %v396 = vld [vmem:[%s243 + $0x358] sm:$0xff]
        %v397 = vld [vmem:[%s243 + $0x360] sm:$0xff]
        %v398 = vld [vmem:[%s243 + $0x368] sm:$0xff]
        %v399 = vld [vmem:[%s243 + $0x370] sm:$0xff]
        %v400 = vld [vmem:[%s243 + $0x378] sm:$0xff]
        %v401 = vld [vmem:[%s243 + $0x380] sm:$0xff]
        %v402 = vld [vmem:[%s243 + $0x388] sm:$0xff]
        %v403 = vld [vmem:[%s243 + $0x390] sm:$0xff]
        %v404 = vld [vmem:[%s243 + $0x398] sm:$0xff]
        %v405 = vld [vmem:[%s243 + $0x3a0] sm:$0xff]
        %v406 = vld [vmem:[%s243 + $0x3a8] sm:$0xff]
        %v407 = vld [vmem:[%s243 + $0x3b0] sm:$0xff]
        %v408 = vld [vmem:[%s243 + $0x3b8] sm:$0xff]
        %v409 = vld [vmem:[%s243 + $0x3c0] sm:$0xff]
        %v410 = vld [vmem:[%s243 + $0x3c8] sm:$0xff]
        %v411 = vld [vmem:[%s243 + $0x3d0] sm:$0xff]
        %v412 = vld [vmem:[%s243 + $0x3d8] sm:$0xff]
        %v413 = vld [vmem:[%s243 + $0x3e0] sm:$0xff]
        %v414 = vld [vmem:[%s243 + $0x3e8] sm:$0xff]
        %v415 = vld [vmem:[%s243 + $0x3f0] sm:$0xff]
        %v416 = vld [vmem:[%s243 + $0x3f8] sm:$0xff]
        %v419 = vunpack.c.l.b16 %v287
        %v420 = vunpack.c.h.b16 %v287
        %v421 = vunpack.c.l.b16 %v288
        %v422 = vunpack.c.h.b16 %v288
        %v423 = vpack.c.b16 %v419, %v419
        %v424 = vpack.c.b16 %v420, %v420
        %v425 = vpack.c.b16 %v421, %v421
        %v426 = vpack.c.b16 %v422, %v422
        %v559 = vunpack.c.l.b16 %v289
        %v560 = vunpack.c.h.b16 %v289
        %v561 = vunpack.c.l.b16 %v290
        %v562 = vunpack.c.h.b16 %v290
        %v563 = vunpack.c.l.b16 %v291
        %v564 = vunpack.c.h.b16 %v291
        %v565 = vunpack.c.l.b16 %v292
        %v566 = vunpack.c.h.b16 %v292
        %v567 = vunpack.c.l.b16 %v293
        %v568 = vunpack.c.h.b16 %v293
        %v569 = vunpack.c.l.b16 %v294
        %v570 = vunpack.c.h.b16 %v294
        %v571 = vunpack.c.l.b16 %v295
        %v572 = vunpack.c.h.b16 %v295
        %v573 = vunpack.c.l.b16 %v296
        %v574 = vunpack.c.h.b16 %v296
        %v575 = vunpack.c.l.b16 %v297
        %v576 = vunpack.c.h.b16 %v297
        %v577 = vunpack.c.l.b16 %v298
        %v578 = vunpack.c.h.b16 %v298
        %v579 = vunpack.c.l.b16 %v299
        %v580 = vunpack.c.h.b16 %v299
        %v581 = vunpack.c.l.b16 %v300
        %v582 = vunpack.c.h.b16 %v300
        %v583 = vunpack.c.l.b16 %v301
        %v584 = vunpack.c.h.b16 %v301
        %v585 = vunpack.c.l.b16 %v302
        %v586 = vunpack.c.h.b16 %v302
        %v587 = vunpack.c.l.b16 %v303
        %v588 = vunpack.c.h.b16 %v303
        %v589 = vunpack.c.l.b16 %v304
        %v590 = vunpack.c.h.b16 %v304
        %v591 = vunpack.c.l.b16 %v305
        %v592 = vunpack.c.h.b16 %v305
        %v593 = vunpack.c.l.b16 %v306
        %v594 = vunpack.c.h.b16 %v306
        %v595 = vunpack.c.l.b16 %v307
        %v596 = vunpack.c.h.b16 %v307
        %v597 = vunpack.c.l.b16 %v308
        %v598 = vunpack.c.h.b16 %v308
        %v599 = vunpack.c.l.b16 %v309
        %v600 = vunpack.c.h.b16 %v309
        %v601 = vunpack.c.l.b16 %v310
        %v602 = vunpack.c.h.b16 %v310
        %v603 = vunpack.c.l.b16 %v311
        %v604 = vunpack.c.h.b16 %v311
        %v605 = vunpack.c.l.b16 %v312
        %v606 = vunpack.c.h.b16 %v312
        %v607 = vunpack.c.l.b16 %v313
        %v608 = vunpack.c.h.b16 %v313
        %v609 = vunpack.c.l.b16 %v314
        %v610 = vunpack.c.h.b16 %v314
        %v611 = vunpack.c.l.b16 %v315
        %v612 = vunpack.c.h.b16 %v315
        %v613 = vunpack.c.l.b16 %v316
        %v614 = vunpack.c.h.b16 %v316
        %v615 = vunpack.c.l.b16 %v317
        %v616 = vunpack.c.h.b16 %v317
        %v617 = vunpack.c.l.b16 %v318
        %v618 = vunpack.c.h.b16 %v318
        %v619 = vunpack.c.l.b16 %v319
        %v620 = vunpack.c.h.b16 %v319
        %v621 = vunpack.c.l.b16 %v320
        %v622 = vunpack.c.h.b16 %v320
        %v623 = vunpack.c.l.b16 %v321
        %v624 = vunpack.c.h.b16 %v321
        %v625 = vunpack.c.l.b16 %v322
        %v626 = vunpack.c.h.b16 %v322
        %v627 = vunpack.c.l.b16 %v323
        %v628 = vunpack.c.h.b16 %v323
        %v629 = vunpack.c.l.b16 %v324
        %v630 = vunpack.c.h.b16 %v324
        %v631 = vunpack.c.l.b16 %v325
        %v632 = vunpack.c.h.b16 %v325
        %v633 = vunpack.c.l.b16 %v326
        %v634 = vunpack.c.h.b16 %v326
        %v635 = vunpack.c.l.b16 %v327
        %v636 = vunpack.c.h.b16 %v327
        %v637 = vunpack.c.l.b16 %v328
        %v638 = vunpack.c.h.b16 %v328
        %v639 = vunpack.c.l.b16 %v329
        %v640 = vunpack.c.h.b16 %v329
        %v641 = vunpack.c.l.b16 %v330
        %v642 = vunpack.c.h.b16 %v330
        %v643 = vunpack.c.l.b16 %v331
        %v644 = vunpack.c.h.b16 %v331
        %v645 = vunpack.c.l.b16 %v332
        %v646 = vunpack.c.h.b16 %v332
        %v647 = vunpack.c.l.b16 %v333
        %v648 = vunpack.c.h.b16 %v333
        %v649 = vunpack.c.l.b16 %v334
        %v650 = vunpack.c.h.b16 %v334
        %v651 = vunpack.c.l.b16 %v335
        %v652 = vunpack.c.h.b16 %v335
        %v653 = vunpack.c.l.b16 %v336
        %v654 = vunpack.c.h.b16 %v336
        %v655 = vunpack.c.l.b16 %v337
        %v656 = vunpack.c.h.b16 %v337
        %v657 = vunpack.c.l.b16 %v338
        %v658 = vunpack.c.h.b16 %v338
        %v659 = vunpack.c.l.b16 %v339
        %v660 = vunpack.c.h.b16 %v339
        %v661 = vunpack.c.l.b16 %v340
        %v662 = vunpack.c.h.b16 %v340
        %v663 = vunpack.c.l.b16 %v341
        %v664 = vunpack.c.h.b16 %v341
        %v665 = vunpack.c.l.b16 %v342
        %v666 = vunpack.c.h.b16 %v342
        %v667 = vunpack.c.l.b16 %v343
        %v668 = vunpack.c.h.b16 %v343
        %v669 = vunpack.c.l.b16 %v344
        %v670 = vunpack.c.h.b16 %v344
        %v671 = vunpack.c.l.b16 %v345
        %v672 = vunpack.c.h.b16 %v345
        %v673 = vunpack.c.l.b16 %v346
        %v674 = vunpack.c.h.b16 %v346
        %v675 = vunpack.c.l.b16 %v347
        %v676 = vunpack.c.h.b16 %v347
        %v677 = vunpack.c.l.b16 %v348
        %v678 = vunpack.c.h.b16 %v348
        %v679 = vunpack.c.l.b16 %v349
        %v680 = vunpack.c.h.b16 %v349
        %v681 = vunpack.c.l.b16 %v350
        %v682 = vunpack.c.h.b16 %v350
        %v683 = vunpack.c.l.b16 %v351
        %v684 = vunpack.c.h.b16 %v351
        %v685 = vunpack.c.l.b16 %v352
        %v686 = vunpack.c.h.b16 %v352
        %v687 = vunpack.c.l.b16 %v353
        %v688 = vunpack.c.h.b16 %v353
        %v689 = vunpack.c.l.b16 %v354
        %v690 = vunpack.c.h.b16 %v354
        %v691 = vunpack.c.l.b16 %v355
        %v692 = vunpack.c.h.b16 %v355
        %v693 = vunpack.c.l.b16 %v356
        %v694 = vunpack.c.h.b16 %v356
        %v695 = vunpack.c.l.b16 %v357
        %v696 = vunpack.c.h.b16 %v357
        %v697 = vunpack.c.l.b16 %v358
        %v698 = vunpack.c.h.b16 %v358
        %v699 = vunpack.c.l.b16 %v359
        %v700 = vunpack.c.h.b16 %v359
        %v701 = vunpack.c.l.b16 %v360
        %v702 = vunpack.c.h.b16 %v360
        %v703 = vunpack.c.l.b16 %v361
        %v704 = vunpack.c.h.b16 %v361
        %v705 = vunpack.c.l.b16 %v362
        %v706 = vunpack.c.h.b16 %v362
        %v707 = vunpack.c.l.b16 %v363
        %v708 = vunpack.c.h.b16 %v363
        %v709 = vunpack.c.l.b16 %v364
        %v710 = vunpack.c.h.b16 %v364
        %v711 = vunpack.c.l.b16 %v365
        %v712 = vunpack.c.h.b16 %v365
        %v713 = vunpack.c.l.b16 %v366
        %v714 = vunpack.c.h.b16 %v366
        %v715 = vunpack.c.l.b16 %v367
        %v716 = vunpack.c.h.b16 %v367
        %v717 = vunpack.c.l.b16 %v368
        %v718 = vunpack.c.h.b16 %v368
        %v719 = vunpack.c.l.b16 %v369
        %v720 = vunpack.c.h.b16 %v369
        %v721 = vunpack.c.l.b16 %v370
        %v722 = vunpack.c.h.b16 %v370
        %v723 = vunpack.c.l.b16 %v371
        %v724 = vunpack.c.h.b16 %v371
        %v725 = vunpack.c.l.b16 %v372
        %v726 = vunpack.c.h.b16 %v372
        %v727 = vunpack.c.l.b16 %v373
        %v728 = vunpack.c.h.b16 %v373
        %v729 = vunpack.c.l.b16 %v374
        %v730 = vunpack.c.h.b16 %v374
        %v731 = vunpack.c.l.b16 %v375
        %v732 = vunpack.c.h.b16 %v375
        %v733 = vunpack.c.l.b16 %v376
        %v734 = vunpack.c.h.b16 %v376
        %v735 = vunpack.c.l.b16 %v377
        %v736 = vunpack.c.h.b16 %v377
        %v737 = vunpack.c.l.b16 %v378
        %v738 = vunpack.c.h.b16 %v378
        %v739 = vunpack.c.l.b16 %v379
        %v740 = vunpack.c.h.b16 %v379
        %v741 = vunpack.c.l.b16 %v380
        %v742 = vunpack.c.h.b16 %v380
        %v743 = vunpack.c.l.b16 %v381
        %v744 = vunpack.c.h.b16 %v381
        %v745 = vunpack.c.l.b16 %v382
        %v746 = vunpack.c.h.b16 %v382
        %v747 = vunpack.c.l.b16 %v383
        %v748 = vunpack.c.h.b16 %v383
        %v749 = vunpack.c.l.b16 %v384
        %v750 = vunpack.c.h.b16 %v384
        %v751 = vunpack.c.l.b16 %v385
        %v752 = vunpack.c.h.b16 %v385
        %v753 = vunpack.c.l.b16 %v386
        %v754 = vunpack.c.h.b16 %v386
        %v755 = vunpack.c.l.b16 %v387
        %v756 = vunpack.c.h.b16 %v387
        %v757 = vunpack.c.l.b16 %v388
        %v758 = vunpack.c.h.b16 %v388
        %v759 = vunpack.c.l.b16 %v389
        %v760 = vunpack.c.h.b16 %v389
        %v761 = vunpack.c.l.b16 %v390
        %v762 = vunpack.c.h.b16 %v390
        %v763 = vunpack.c.l.b16 %v391
        %v764 = vunpack.c.h.b16 %v391
        %v765 = vunpack.c.l.b16 %v392
        %v766 = vunpack.c.h.b16 %v392
        %v767 = vunpack.c.l.b16 %v393
        %v768 = vunpack.c.h.b16 %v393
        %v769 = vunpack.c.l.b16 %v394
        %v770 = vunpack.c.h.b16 %v394
        %v771 = vunpack.c.l.b16 %v395
        %v772 = vunpack.c.h.b16 %v395
        %v773 = vunpack.c.l.b16 %v396
        %v774 = vunpack.c.h.b16 %v396
        %v775 = vunpack.c.l.b16 %v397
        %v776 = vunpack.c.h.b16 %v397
        %v777 = vunpack.c.l.b16 %v398
        %v778 = vunpack.c.h.b16 %v398
        %v779 = vunpack.c.l.b16 %v399
        %v780 = vunpack.c.h.b16 %v399
        %v781 = vunpack.c.l.b16 %v400
        %v782 = vunpack.c.h.b16 %v400
        %v783 = vunpack.c.l.b16 %v401
        %v784 = vunpack.c.h.b16 %v401
        %v785 = vunpack.c.l.b16 %v402
        %v786 = vunpack.c.h.b16 %v402
        %v787 = vunpack.c.l.b16 %v403
        %v788 = vunpack.c.h.b16 %v403
        %v789 = vunpack.c.l.b16 %v404
        %v790 = vunpack.c.h.b16 %v404
        %v791 = vunpack.c.l.b16 %v405
        %v792 = vunpack.c.h.b16 %v405
        %v793 = vunpack.c.l.b16 %v406
        %v794 = vunpack.c.h.b16 %v406
        %v795 = vunpack.c.l.b16 %v407
        %v796 = vunpack.c.h.b16 %v407
        %v797 = vunpack.c.l.b16 %v408
        %v798 = vunpack.c.h.b16 %v408
        %v799 = vunpack.c.l.b16 %v409
        %v800 = vunpack.c.h.b16 %v409
        %v801 = vunpack.c.l.b16 %v410
        %v802 = vunpack.c.h.b16 %v410
        %v803 = vunpack.c.l.b16 %v411
        %v804 = vunpack.c.h.b16 %v411
        %v805 = vunpack.c.l.b16 %v412
        %v806 = vunpack.c.h.b16 %v412
        %v807 = vunpack.c.l.b16 %v413
        %v808 = vunpack.c.h.b16 %v413
        %v809 = vunpack.c.l.b16 %v414
        %v810 = vunpack.c.h.b16 %v414
        %v811 = vunpack.c.l.b16 %v415
        %v812 = vunpack.c.h.b16 %v415
        %v813 = vunpack.c.l.b16 %v416
        %v814 = vunpack.c.h.b16 %v416
        %v815 = vpack.c.b16 %v563, %v559
        %v816 = vpack.c.b16 %v564, %v560
        %v817 = vpack.c.b16 %v565, %v561
        %v818 = vpack.c.b16 %v566, %v562
        %v819 = vpack.c.b16 %v571, %v567
        %v820 = vpack.c.b16 %v572, %v568
        %v821 = vpack.c.b16 %v573, %v569
        %v822 = vpack.c.b16 %v574, %v570
        %v823 = vpack.c.b16 %v579, %v575
        %v824 = vpack.c.b16 %v580, %v576
        %v825 = vpack.c.b16 %v581, %v577
        %v826 = vpack.c.b16 %v582, %v578
        %v827 = vpack.c.b16 %v587, %v583
        %v828 = vpack.c.b16 %v588, %v584
        %v829 = vpack.c.b16 %v589, %v585
        %v830 = vpack.c.b16 %v590, %v586
        %v831 = vpack.c.b16 %v595, %v591
        %v832 = vpack.c.b16 %v596, %v592
        %v833 = vpack.c.b16 %v597, %v593
        %v834 = vpack.c.b16 %v598, %v594
        %v835 = vpack.c.b16 %v603, %v599
        %v836 = vpack.c.b16 %v604, %v600
        %v837 = vpack.c.b16 %v605, %v601
        %v838 = vpack.c.b16 %v606, %v602
        %v839 = vpack.c.b16 %v611, %v607
        %v840 = vpack.c.b16 %v612, %v608
        %v841 = vpack.c.b16 %v613, %v609
        %v842 = vpack.c.b16 %v614, %v610
        %v843 = vpack.c.b16 %v619, %v615
        %v844 = vpack.c.b16 %v620, %v616
        %v845 = vpack.c.b16 %v621, %v617
        %v846 = vpack.c.b16 %v622, %v618
        %v847 = vpack.c.b16 %v627, %v623
        %v848 = vpack.c.b16 %v628, %v624
        %v849 = vpack.c.b16 %v629, %v625
        %v850 = vpack.c.b16 %v630, %v626
        %v851 = vpack.c.b16 %v635, %v631
        %v852 = vpack.c.b16 %v636, %v632
        %v853 = vpack.c.b16 %v637, %v633
        %v854 = vpack.c.b16 %v638, %v634
        %v855 = vpack.c.b16 %v643, %v639
        %v856 = vpack.c.b16 %v644, %v640
        %v857 = vpack.c.b16 %v645, %v641
        %v858 = vpack.c.b16 %v646, %v642
        %v859 = vpack.c.b16 %v651, %v647
        %v860 = vpack.c.b16 %v652, %v648
        %v861 = vpack.c.b16 %v653, %v649
        %v862 = vpack.c.b16 %v654, %v650
        %v863 = vpack.c.b16 %v659, %v655
        %v864 = vpack.c.b16 %v660, %v656
        %v865 = vpack.c.b16 %v661, %v657
        %v866 = vpack.c.b16 %v662, %v658
        %v867 = vpack.c.b16 %v667, %v663
        %v868 = vpack.c.b16 %v668, %v664
        %v869 = vpack.c.b16 %v669, %v665
        %v870 = vpack.c.b16 %v670, %v666
        %v871 = vpack.c.b16 %v675, %v671
        %v872 = vpack.c.b16 %v676, %v672
        %v873 = vpack.c.b16 %v677, %v673
        %v874 = vpack.c.b16 %v678, %v674
        %v875 = vpack.c.b16 %v683, %v679
        %v876 = vpack.c.b16 %v684, %v680
        %v877 = vpack.c.b16 %v685, %v681
        %v878 = vpack.c.b16 %v686, %v682
        %v879 = vpack.c.b16 %v691, %v687
        %v880 = vpack.c.b16 %v692, %v688
        %v881 = vpack.c.b16 %v693, %v689
        %v882 = vpack.c.b16 %v694, %v690
        %v883 = vpack.c.b16 %v699, %v695
        %v884 = vpack.c.b16 %v700, %v696
        %v885 = vpack.c.b16 %v701, %v697
        %v886 = vpack.c.b16 %v702, %v698
        %v887 = vpack.c.b16 %v707, %v703
        %v888 = vpack.c.b16 %v708, %v704
        %v889 = vpack.c.b16 %v709, %v705
        %v890 = vpack.c.b16 %v710, %v706
        %v891 = vpack.c.b16 %v715, %v711
        %v892 = vpack.c.b16 %v716, %v712
        %v893 = vpack.c.b16 %v717, %v713
        %v894 = vpack.c.b16 %v718, %v714
        %v895 = vpack.c.b16 %v723, %v719
        %v896 = vpack.c.b16 %v724, %v720
        %v897 = vpack.c.b16 %v725, %v721
        %v898 = vpack.c.b16 %v726, %v722
        %v899 = vpack.c.b16 %v731, %v727
        %v900 = vpack.c.b16 %v732, %v728
        %v901 = vpack.c.b16 %v733, %v729
        %v902 = vpack.c.b16 %v734, %v730
        %v903 = vpack.c.b16 %v739, %v735
        %v904 = vpack.c.b16 %v740, %v736
        %v905 = vpack.c.b16 %v741, %v737
        %v906 = vpack.c.b16 %v742, %v738
        %v907 = vpack.c.b16 %v747, %v743
        %v908 = vpack.c.b16 %v748, %v744
        %v909 = vpack.c.b16 %v749, %v745
        %v910 = vpack.c.b16 %v750, %v746
        %v911 = vpack.c.b16 %v755, %v751
        %v912 = vpack.c.b16 %v756, %v752
        %v913 = vpack.c.b16 %v757, %v753
        %v914 = vpack.c.b16 %v758, %v754
        %v915 = vpack.c.b16 %v763, %v759
        %v916 = vpack.c.b16 %v764, %v760
        %v917 = vpack.c.b16 %v765, %v761
        %v918 = vpack.c.b16 %v766, %v762
        %v919 = vpack.c.b16 %v771, %v767
        %v920 = vpack.c.b16 %v772, %v768
        %v921 = vpack.c.b16 %v773, %v769
        %v922 = vpack.c.b16 %v774, %v770
        %v923 = vpack.c.b16 %v779, %v775
        %v924 = vpack.c.b16 %v780, %v776
        %v925 = vpack.c.b16 %v781, %v777
        %v926 = vpack.c.b16 %v782, %v778
        %v927 = vpack.c.b16 %v787, %v783
        %v928 = vpack.c.b16 %v788, %v784
        %v929 = vpack.c.b16 %v789, %v785
        %v930 = vpack.c.b16 %v790, %v786
        %v931 = vpack.c.b16 %v795, %v791
        %v932 = vpack.c.b16 %v796, %v792
        %v933 = vpack.c.b16 %v797, %v793
        %v934 = vpack.c.b16 %v798, %v794
        %v935 = vpack.c.b16 %v803, %v799
        %v936 = vpack.c.b16 %v804, %v800
        %v937 = vpack.c.b16 %v805, %v801
        %v938 = vpack.c.b16 %v806, %v802
        %v939 = vpack.c.b16 %v811, %v807
        %v940 = vpack.c.b16 %v812, %v808
        %v941 = vpack.c.b16 %v813, %v809
        %v942 = vpack.c.b16 %v814, %v810
        %1071 = vmatprep.subr.bf16.mxu0 %v816
        %1072 = vmatpush1.bf16.msra.mxu0 %v815
        %1073 = vmatprep.subr.bf16.mxu0 %v820
        %1074 = vmatpush1.bf16.msra.mxu0 %v819
        %1075 = vmatprep.subr.bf16.mxu0 %v824
        %1076 = vmatpush1.bf16.msra.mxu0 %v823
        %1077 = vmatprep.subr.bf16.mxu0 %v828
        %1078 = vmatpush1.bf16.msra.mxu0 %v827
        %1079 = vmatprep.subr.bf16.mxu0 %v832
        %1080 = vmatpush1.bf16.msra.mxu0 %v831
        %1081 = vmatprep.subr.bf16.mxu0 %v836
        %1082 = vmatpush1.bf16.msra.mxu0 %v835
        %1083 = vmatprep.subr.bf16.mxu0 %v840
        %1084 = vmatpush1.bf16.msra.mxu0 %v839
        %1085 = vmatprep.subr.bf16.mxu0 %v844
        %1086 = vmatpush1.bf16.msra.mxu0 %v843
        %1087 = vmatprep.subr.bf16.mxu0 %v848
        %1088 = vmatpush1.bf16.msra.mxu0 %v847
        %1089 = vmatprep.subr.bf16.mxu0 %v852
        %1090 = vmatpush1.bf16.msra.mxu0 %v851
        %1091 = vmatprep.subr.bf16.mxu0 %v856
        %1092 = vmatpush1.bf16.msra.mxu0 %v855
        %1093 = vmatprep.subr.bf16.mxu0 %v860
        %1094 = vmatpush1.bf16.msra.mxu0 %v859
        %1095 = vmatprep.subr.bf16.mxu0 %v864
        %1096 = vmatpush1.bf16.msra.mxu0 %v863
        %1097 = vmatprep.subr.bf16.mxu0 %v868
        %1098 = vmatpush1.bf16.msra.mxu0 %v867
        %1099 = vmatprep.subr.bf16.mxu0 %v872
        %1100 = vmatpush1.bf16.msra.mxu0 %v871
        %1101 = vmatprep.subr.bf16.mxu0 %v876
        %1102 = vmatpush1.bf16.msra.mxu0 %v875
        %1103 = vmatprep.mubr.bf16.mxu0 %v424
        %1104 = vmatmul.mubr.bf16.gmra.mrb[0].mxu0 %v423
        %v1105 = vpop.f32.mrb[0].mxu0
        %v1106 = vadd.f32 0.0, %v1105
        %v1107 = vpop.f32.mrb[0].mxu0
        %v1108 = vadd.f32 0.0, %v1107
        %v1109 = vpop.f32.mrb[0].mxu0
        %v1110 = vpop.f32.mrb[0].mxu0
        %1111 = vdwg.mxu0
        %1112 = vmatprep.subr.bf16.mxu0 %v880
        %1113 = vmatpush1.bf16.msra.mxu0 %v879
        %1114 = vmatprep.subr.bf16.mxu0 %v884
        %1115 = vmatpush1.bf16.msra.mxu0 %v883
        %1116 = vmatprep.subr.bf16.mxu0 %v888
        %1117 = vmatpush1.bf16.msra.mxu0 %v887
        %1118 = vmatprep.subr.bf16.mxu0 %v892
        %1119 = vmatpush1.bf16.msra.mxu0 %v891
        %1120 = vmatprep.subr.bf16.mxu0 %v896
        %1121 = vmatpush1.bf16.msra.mxu0 %v895
        %1122 = vmatprep.subr.bf16.mxu0 %v900
        %1123 = vmatpush1.bf16.msra.mxu0 %v899
        %1124 = vmatprep.subr.bf16.mxu0 %v904
        %1125 = vmatpush1.bf16.msra.mxu0 %v903
        %1126 = vmatprep.subr.bf16.mxu0 %v908
        %1127 = vmatpush1.bf16.msra.mxu0 %v907
        %1128 = vmatprep.subr.bf16.mxu0 %v912
        %1129 = vmatpush1.bf16.msra.mxu0 %v911
        %1130 = vmatprep.subr.bf16.mxu0 %v916
        %1131 = vmatpush1.bf16.msra.mxu0 %v915
        %1132 = vmatprep.subr.bf16.mxu0 %v920
        %1133 = vmatpush1.bf16.msra.mxu0 %v919
        %1134 = vmatprep.subr.bf16.mxu0 %v924
        %1135 = vmatpush1.bf16.msra.mxu0 %v923
        %1136 = vmatprep.subr.bf16.mxu0 %v928
        %1137 = vmatpush1.bf16.msra.mxu0 %v927
        %1138 = vmatprep.subr.bf16.mxu0 %v932
        %1139 = vmatpush1.bf16.msra.mxu0 %v931
        %1140 = vmatprep.subr.bf16.mxu0 %v936
        %1141 = vmatpush1.bf16.msra.mxu0 %v935
        %1142 = vmatprep.subr.bf16.mxu0 %v940
        %1143 = vmatpush1.bf16.msra.mxu0 %v939
        %1144 = vmatprep.mubr.bf16.mxu0 %v426
        %1145 = vmatmul.mubr.bf16.gmra.mrb[0].mxu0 %v425
        %v1146 = vpop.f32.mrb[0].mxu0
        %v1147 = vadd.f32 %v1106, %v1146
        %v1148 = vpop.f32.mrb[0].mxu0
        %v1149 = vadd.f32 %v1108, %v1148
        %v1150 = vpop.f32.mrb[0].mxu0
        %v1151 = vpop.f32.mrb[0].mxu0
        %1152 = vdwg.mxu0
        %1153 = vmatprep.subr.bf16.mxu0 %v818
        %1154 = vmatpush1.bf16.msra.mxu0 %v817
        %1155 = vmatprep.subr.bf16.mxu0 %v822
        %1156 = vmatpush1.bf16.msra.mxu0 %v821
        %1157 = vmatprep.subr.bf16.mxu0 %v826
        %1158 = vmatpush1.bf16.msra.mxu0 %v825
        %1159 = vmatprep.subr.bf16.mxu0 %v830
        %1160 = vmatpush1.bf16.msra.mxu0 %v829
        %1161 = vmatprep.subr.bf16.mxu0 %v834
        %1162 = vmatpush1.bf16.msra.mxu0 %v833
        %1163 = vmatprep.subr.bf16.mxu0 %v838
        %1164 = vmatpush1.bf16.msra.mxu0 %v837
        %1165 = vmatprep.subr.bf16.mxu0 %v842
        %1166 = vmatpush1.bf16.msra.mxu0 %v841
        %1167 = vmatprep.subr.bf16.mxu0 %v846
        %1168 = vmatpush1.bf16.msra.mxu0 %v845
        %1169 = vmatprep.subr.bf16.mxu0 %v850
        %1170 = vmatpush1.bf16.msra.mxu0 %v849
        %1171 = vmatprep.subr.bf16.mxu0 %v854
        %1172 = vmatpush1.bf16.msra.mxu0 %v853
        %1173 = vmatprep.subr.bf16.mxu0 %v858
        %1174 = vmatpush1.bf16.msra.mxu0 %v857
        %1175 = vmatprep.subr.bf16.mxu0 %v862
        %1176 = vmatpush1.bf16.msra.mxu0 %v861
        %1177 = vmatprep.subr.bf16.mxu0 %v866
        %1178 = vmatpush1.bf16.msra.mxu0 %v865
        %1179 = vmatprep.subr.bf16.mxu0 %v870
        %1180 = vmatpush1.bf16.msra.mxu0 %v869
        %1181 = vmatprep.subr.bf16.mxu0 %v874
        %1182 = vmatpush1.bf16.msra.mxu0 %v873
        %1183 = vmatprep.subr.bf16.mxu0 %v878
        %1184 = vmatpush1.bf16.msra.mxu0 %v877
        %1185 = vmatprep.mubr.bf16.mxu0 %v424
        %1186 = vmatmul.mubr.bf16.gmra.mrb[0].mxu0 %v423
        %v1187 = vpop.f32.mrb[0].mxu0
        %v1188 = vadd.f32 0.0, %v1187
        %v1189 = vpop.f32.mrb[0].mxu0
        %v1190 = vadd.f32 0.0, %v1189
        %v1191 = vpop.f32.mrb[0].mxu0
        %v1192 = vpop.f32.mrb[0].mxu0
        %1193 = vdwg.mxu0
        %1194 = vmatprep.subr.bf16.mxu0 %v882
        %1195 = vmatpush1.bf16.msra.mxu0 %v881
        %1196 = vmatprep.subr.bf16.mxu0 %v886
        %1197 = vmatpush1.bf16.msra.mxu0 %v885
        %1198 = vmatprep.subr.bf16.mxu0 %v890
        %1199 = vmatpush1.bf16.msra.mxu0 %v889
        %1200 = vmatprep.subr.bf16.mxu0 %v894
        %1201 = vmatpush1.bf16.msra.mxu0 %v893
        %1202 = vmatprep.subr.bf16.mxu0 %v898
        %1203 = vmatpush1.bf16.msra.mxu0 %v897
        %1204 = vmatprep.subr.bf16.mxu0 %v902
        %1205 = vmatpush1.bf16.msra.mxu0 %v901
        %1206 = vmatprep.subr.bf16.mxu0 %v906
        %1207 = vmatpush1.bf16.msra.mxu0 %v905
        %1208 = vmatprep.subr.bf16.mxu0 %v910
        %1209 = vmatpush1.bf16.msra.mxu0 %v909
        %1210 = vmatprep.subr.bf16.mxu0 %v914
        %1211 = vmatpush1.bf16.msra.mxu0 %v913
        %1212 = vmatprep.subr.bf16.mxu0 %v918
        %1213 = vmatpush1.bf16.msra.mxu0 %v917
        %1214 = vmatprep.subr.bf16.mxu0 %v922
        %1215 = vmatpush1.bf16.msra.mxu0 %v921
        %1216 = vmatprep.subr.bf16.mxu0 %v926
        %1217 = vmatpush1.bf16.msra.mxu0 %v925
        %1218 = vmatprep.subr.bf16.mxu0 %v930
        %1219 = vmatpush1.bf16.msra.mxu0 %v929
        %1220 = vmatprep.subr.bf16.mxu0 %v934
        %1221 = vmatpush1.bf16.msra.mxu0 %v933
        %1222 = vmatprep.subr.bf16.mxu0 %v938
        %1223 = vmatpush1.bf16.msra.mxu0 %v937
        %1224 = vmatprep.subr.bf16.mxu0 %v942
        %1225 = vmatpush1.bf16.msra.mxu0 %v941
        %1226 = vmatprep.mubr.bf16.mxu0 %v426
        %1227 = vmatmul.mubr.bf16.gmra.mrb[0].mxu0 %v425
        %v1228 = vpop.f32.mrb[0].mxu0
        %v1229 = vadd.f32 %v1188, %v1228
        %v1230 = vpop.f32.mrb[0].mxu0
        %v1231 = vadd.f32 %v1190, %v1230
        %v1232 = vpop.f32.mrb[0].mxu0
        %v1233 = vpop.f32.mrb[0].mxu0
        %1234 = vdwg.mxu0
        %v1235 = vadd.f32 %v283, %v1147
        %v1236 = vadd.f32 %v284, %v1149
        %v1237 = vadd.f32 %v285, %v1229
        %v1238 = vadd.f32 %v286, %v1231
        %1239 = vst [vmem:[#allocation2] sm:$0xff] %v1235
        %1240 = vst [vmem:[#allocation2 + $0x8] sm:$0xff] %v1236
        %1241 = vst [vmem:[#allocation2 + $0x10] sm:$0xff] %v1237
        %1242 = vst [vmem:[#allocation2 + $0x18] sm:$0xff] %v1238
        %p1243 = scmp.eq.s32.totalorder %s28, 3
        // Predicated region
        $region49: #{tpu_custom_call.1} parent=31 // pred_check
          %p1244 = pneg %p1243
        $region50: #{tpu_custom_call.1} parent=31 // pred_check_branch
          %1246 = sbr.rel (%p1244) target = $region52
        $region51: #{tpu_custom_call.1} parent=31 // pred_region
          %v1247 = vld [vmem:[#allocation2] sm:$0xff]
          %v1248 = vld [vmem:[#allocation2 + $0x8] sm:$0xff]
          %v1249 = vld [vmem:[#allocation2 + $0x10] sm:$0xff]
          %v1250 = vld [vmem:[#allocation2 + $0x18] sm:$0xff]
          %v1251 = vld [vmem:[#allocation8] sm:$0xf]
          %v1253 = vlaneseq
          %v1254 = vshrl.u32 %v1253, 7
          %v1255 = vsub.s32 0, %v1254
          %v1256 = vrot.slane %v1251, %v1255
          %v1257 = vlaneseq
          %v1258 = vshrl.u32 %v1257, 7
          %v1259 = vsub.s32 1, %v1258
          %v1260 = vrot.slane %v1251, %v1259
          %v1261 = vlaneseq
          %v1262 = vshrl.u32 %v1261, 7
          %v1263 = vsub.s32 2, %v1262
          %v1264 = vrot.slane %v1251, %v1263
          %v1265 = vlaneseq
          %v1266 = vshrl.u32 %v1265, 7
          %v1267 = vsub.s32 3, %v1266
          %v1268 = vrot.slane %v1251, %v1267
          %v1273 = vadd.f32 %v1247, %v1256
          %v1274 = vadd.f32 %v1248, %v1260
          %v1275 = vadd.f32 %v1249, %v1264
          %v1276 = vadd.f32 %v1250, %v1268
          %1277 = vst [vmem:[#allocation9] sm:$0xff] %v1273
          %1278 = vst [vmem:[#allocation9 + $0x8] sm:$0xff] %v1274
          %1279 = vst [vmem:[#allocation9 + $0x10] sm:$0xff] %v1275
          %1280 = vst [vmem:[#allocation9 + $0x18] sm:$0xff] %v1276
        $region52: #{tpu_custom_call.1} parent=31 // pred_fallthru
          _
        // Predicated region
        $region53: #{tpu_custom_call.1} parent=31 // pred_check
          %p1281 = pneg %p142
        $region54: #{tpu_custom_call.1} parent=31 // pred_check_branch
          %1283 = sbr.rel (%p1281) target = $region56
        $region55: #{tpu_custom_call.1} parent=31 // pred_region
          %s1284 = smul.u32 4, %s27
          %s1286 = ssub.s32 512, 512
          %1287 = vsyncadd [#allocation5], %s1286
          %s1288 = smul.addr %s26, 4
          %s1289 = sadd.s32 %s1284, %s1288
          %s1290 = smul.addr %s1289, 128
          %s1291 = scalar_lea.hbm %s3, %s1290
          %s1293 = sshll.u32 [#allocation9], 4
          %s1294 = int_to_ptr.vmem [resolvable:$true] %s1293
          %1296 = dma.vmem_to_hbm [thread:$0]  %s1294, 512, %s1291, [#allocation5]
        $region56: #{tpu_custom_call.1} parent=31 // pred_fallthru
          _
        // Predicated region
        $region57: #{tpu_custom_call.1} parent=31 // pred_check
          %p1297 = pneg %p142
        $region58: #{tpu_custom_call.1} parent=31 // pred_check_branch
          %1299 = sbr.rel (%p1297) target = $region60
        $region59: #{tpu_custom_call.1} parent=31 // pred_region
          %1300 = dma.done [#allocation5], 512
        $region60: #{tpu_custom_call.1} parent=31 // pred_fallthru
          _
      $region32: #{tpu_custom_call.1} parent=5 // pred_fallthru
        _
      %p1301 = scmp.le.s32.totalorder 2, %s16
      // Predicated region
      $region61: #{tpu_custom_call.1} parent=5 // pred_check
        %p1302 = pneg %p1301
      $region62: #{tpu_custom_call.1} parent=5 // pred_check_branch
        %1304 = sbr.rel (%p1302) target = $region64
      $region63: #{tpu_custom_call.1} parent=5 // pred_region
        %s1305 = ssub.s32 %s16, 2
      $region64: #{tpu_custom_call.1} parent=5 // pred_fallthru
        _
    $region6: #{tpu_custom_call.1} parent=1 // loop_footer
      %s20 = sadd.s32 1, %s16
    $region7: #{tpu_custom_call.1} parent=1 // loop_footer_branch
      %15 = sbr.rel target = $region3
    $region8: #{tpu_custom_call.1} parent=1 // loop_exit
      _
    %1306 = vsyncpa [#allocation4], 1
    %s1307 = scalar_lea.sflag [#allocation4], 1
    %1308 = vsyncpa %s1307, 1
    %1309 = vsyncpa [#allocation7], 1
    %s1310 = scalar_lea.sflag [#allocation7], 1
    %1311 = vsyncpa %s1310, 1
    %1312 = vsyncpa [#allocation5], 1
    %s1313 = scalar_lea.sflag [#allocation5], 1
    %1314 = vsyncpa %s1313, 1

</llo_original>
